<compile_context>
chip_gen: v7x
topology: tpu7x:2x2x1
jax: 0.10.0
libtpu: 0.0.40
codegen_flags: <defaults>
</compile_context>

<pallas_src>
import functools

import numpy as np
import jax
import jax.numpy as jnp
from jax.experimental import pallas as pl
from jax.experimental.pallas import tpu as pltpu


def _round_up(x, m):
    return ((x + m - 1) // m) * m


def _next_pow2(x):
    p = 1
    while p < x:
        p *= 2
    return p


def _pick_packing(D):
    """Return (k, D_pad): k timestamps packed per 128-lane row, D_pad cols each."""
    if D <= 128:
        D_pad = _next_pow2(max(D, 1))     # a divisor of 128
        k = 128 // D_pad
    else:
        D_pad = _round_up(D, 128)
        k = 1
    return k, D_pad


def make_time_encode_tables(basis_freq, phase):
    """Precompute tiny VMEM-resident constants once per (basis_freq, phase)."""
    D = int(basis_freq.shape[0])
    k, D_pad = _pick_packing(D)
    LD = k * D_pad
    freq_pad = jnp.zeros((D_pad,), jnp.float32).at[:D].set(basis_freq.astype(jnp.float32))
    phase_pad = jnp.zeros((D_pad,), jnp.float32).at[:D].set(phase.astype(jnp.float32))
    freq_tiled = jnp.tile(freq_pad[None, :], (1, k))           # (1, LD)
    phase_tiled = jnp.tile(phase_pad[None, :], (1, k))         # (1, LD)
    group = (jnp.arange(LD, dtype=jnp.int32) // D_pad)[None, :]
    sel = (group == jnp.arange(k, dtype=jnp.int32)[:, None]).astype(jnp.float32)
    sel_freq = sel * freq_tiled                                 # (k, LD)
    return {"D": D, "k": k, "D_pad": D_pad, "LD": LD,
            "sel_freq": sel_freq, "phase_tiled": phase_tiled}


def time_encode_kernel(ts_ref, sel_freq_ref, phase_ref, out_ref, *, k):
    # ts_ref:       (TR, k)   packed timestamps
    # sel_freq_ref: (k, LD)   per-group frequency selector (zero outside own group)
    # phase_ref:    (1, LD)   tiled (and zero-padded) phase
    # out_ref:      (TR, LD)  lane-dense output tile
    ts = ts_ref[...]
    if k == 1:
        # Single timestamp per row: a plain VPU broadcast FMA is exact and cheap.
        arg = ts * sel_freq_ref[...] + phase_ref[...]
    else:
        # Selector contraction on the (otherwise idle) MXU; HIGHEST keeps f32.
        arg = jnp.dot(ts, sel_freq_ref[...],
                      preferred_element_type=jnp.float32,
                      precision=jax.lax.Precision.HIGHEST) + phase_ref[...]
    out_ref[...] = jnp.cos(arg).astype(out_ref.dtype)


def time_encode(ts, basis_freq, phase, *, tables=None, tile_rows=8192,
                out_dtype=jnp.float32, use_pallas=None):
    """ts: (batch, seq) -> (batch, seq, time_dim) = cos(ts*freq + phase)."""
    batch, seq = ts.shape
    D = int(basis_freq.shape[0])
    rows = batch * seq

    # Small/medium workloads: plain jnp so XLA fuses with neighbors
    # (pallas_call launch + pipeline ramp is microsecond-scale).
    if use_pallas is None:
        use_pallas = rows * D >= (1 << 19)
    if not use_pallas:
        out = jnp.cos(ts[:, :, None] * basis_freq[None, None, :]
                      + phase[None, None, :])
        return out.astype(out_dtype)

    if tables is None:
        tables = make_time_encode_tables(basis_freq, phase)
    k, D_pad, LD = tables["k"], tables["D_pad"], tables["LD"]
    sel_freq, phase_tiled = tables["sel_freq"], tables["phase_tiled"]

    ts_flat = ts.reshape(rows).astype(jnp.float32)
    padded_rows = _round_up(rows, k)              # only pad to a multiple of k
    if padded_rows != rows:
        ts_flat = jnp.pad(ts_flat, (0, padded_rows - rows))
    packed_rows = padded_rows // k
    ts_packed = ts_flat.reshape(packed_rows, k)

    # Row-tile selection:
    #  - cap by VMEM (double-buffered out tile + lane-padded ts tile < ~24 MiB)
    #  - keep >= ~4 grid steps so v7x megacore sharding & pipelining engage
    out_itemsize = jnp.dtype(out_dtype).itemsize
    vmem_budget = 12 * 1024 * 1024                       # per single buffer copy
    tr_vmem_cap = max(8, (vmem_budget // (LD * out_itemsize + 512)) // 8 * 8)
    tr_grid_cap = max(8, _round_up(pl.cdiv(packed_rows, 4), 8))
    TR = min(int(tile_rows), tr_vmem_cap, tr_grid_cap)
    TR = max(8, _round_up(TR, 8))
    grid = (pl.cdiv(packed_rows, TR),)                   # partial last block OK

    cost = pl.CostEstimate(
        flops=2 * packed_rows * k * LD,
        transcendentals=packed_rows * LD,
        bytes_accessed=packed_rows * k * 4 + packed_rows * LD * out_itemsize,
    )

    out_packed = pl.pallas_call(
        functools.partial(time_encode_kernel, k=k),
        out_shape=jax.ShapeDtypeStruct((packed_rows, LD), out_dtype),
        grid=grid,
        in_specs=[
            pl.BlockSpec((TR, k), lambda i: (i, 0)),     # row tile of packed ts
            pl.BlockSpec((k, LD), lambda i: (0, 0)),     # VMEM-resident constant
            pl.BlockSpec((1, LD), lambda i: (0, 0)),     # VMEM-resident constant
        ],
        out_specs=pl.BlockSpec((TR, LD), lambda i: (i, 0)),
        compiler_params=pltpu.CompilerParams(
            dimension_semantics=("parallel",),           # shard rows over TCs (v7x)
            vmem_limit_bytes=32 * 1024 * 1024,
        ),
        cost_estimate=cost,
    )(ts_packed, sel_freq, phase_tiled)

    out = out_packed.reshape(padded_rows, D_pad)
    if D_pad != D:
        out = out[:, :D]
    if padded_rows != rows:
        out = out[:rows]
    return out.reshape(batch, seq, D)


def init_time_encode_params(expand_dim):
    """Deterministic parameter init matching TimeEncode.__init__."""
    time_dim = expand_dim
    basis_freq = jnp.asarray(
        1.0 / 10.0 ** np.linspace(0, 9, time_dim), dtype=jnp.float32
    )
    phase = jnp.zeros((time_dim,), dtype=jnp.float32)
    return basis_freq, phase


def _reference(ts, basis_freq, phase):
    return jnp.cos(ts[:, :, None] * basis_freq[None, None, :]
                   + phase[None, None, :])


if __name__ == "__main__":
    # 1) Small demo shape consistent with the module (force the Pallas path).
    batch, seq, expand_dim = 2, 8, 32
    basis_freq, phase = init_time_encode_params(expand_dim)
    tables = make_time_encode_tables(basis_freq, phase)   # hoisted constants
    ts = jax.random.uniform(jax.random.PRNGKey(0), (batch, seq),
                            dtype=jnp.float32) * 100.0
    out = jax.block_until_ready(
        time_encode(ts, basis_freq, phase, tables=tables, use_pallas=True))
    np.testing.assert_allclose(np.asarray(out),
                               np.asarray(_reference(ts, basis_freq, phase)),
                               rtol=1e-5, atol=1e-4)
    assert out.shape == (batch, seq, expand_dim)

    # 2) Ragged shape: multi-step grid + clamped partial last block, MXU path.
    ts2 = jax.random.uniform(jax.random.PRNGKey(1), (3, 1000),
                             dtype=jnp.float32) * 100.0
    out2 = jax.block_until_ready(
        time_encode(ts2, basis_freq, phase, tables=tables, tile_rows=256,
                    use_pallas=True))
    np.testing.assert_allclose(np.asarray(out2),
                               np.asarray(_reference(ts2, basis_freq, phase)),
                               rtol=1e-5, atol=1e-4)

    # 3) time_dim = 128 path (k = 1, plain VPU FMA, lane-dense by construction).
    bf3, ph3 = init_time_encode_params(128)
    ts3 = jax.random.uniform(jax.random.PRNGKey(2), (2, 64),
                             dtype=jnp.float32) * 100.0
    out3 = jax.block_until_ready(time_encode(ts3, bf3, ph3, use_pallas=True))
    np.testing.assert_allclose(np.asarray(out3),
                               np.asarray(_reference(ts3, bf3, ph3)),
                               rtol=1e-5, atol=1e-4)

    # 4) time_dim = 48 (does not divide 128): per-group zero padding to D_pad=64,
    #    k=2, lane-dense 128-wide stores, columns sliced off in the wrapper.
    bf4, ph4 = init_time_encode_params(48)
    ts4 = jax.random.uniform(jax.random.PRNGKey(3), (2, 10),
                             dtype=jnp.float32) * 100.0
    out4 = jax.block_until_ready(time_encode(ts4, bf4, ph4, use_pallas=True))
    np.testing.assert_allclose(np.asarray(out4),
                               np.asarray(_reference(ts4, bf4, ph4)),
                               rtol=1e-5, atol=1e-4)
    assert out4.shape == (2, 10, 48)

    # 5) bf16 output option (cos still computed in f32, cast only at the store).
    out5 = jax.block_until_ready(
        time_encode(ts2, basis_freq, phase, tables=tables,
                    out_dtype=jnp.bfloat16, use_pallas=True))
    np.testing.assert_allclose(np.asarray(out5, dtype=np.float32),
                               np.asarray(_reference(ts2, basis_freq, phase)),
                               rtol=2e-2, atol=1e-2)

    # 6) Auto heuristic falls back to the fused jnp path for small workloads.
    out6 = jax.block_until_ready(time_encode(ts, basis_freq, phase))
    np.testing.assert_allclose(np.asarray(out6),
                               np.asarray(_reference(ts, basis_freq, phase)),
                               rtol=1e-6, atol=1e-6)

    print("KERNEL_OK")
</pallas_src>

<mosaic_0001>
module attributes {stable_mosaic.version = 11 : i64} {
  func.func @time_encode_kernel(%arg0: i32, %arg1: memref<8x4xf32, #tpu.memory_space<vmem>>, %arg2: memref<4x128xf32, #tpu.memory_space<vmem>>, %arg3: memref<1x128xf32, #tpu.memory_space<vmem>>, %arg4: memref<8x128xf32, #tpu.memory_space<vmem>>) attributes {dimension_semantics = [#tpu.dimension_semantics<parallel>], iteration_bounds = array<i64: 1>, scalar_prefetch = 0 : i64, scratch_operands = 0 : i64, tpu.core_type = #tpu.core_type<tc>, window_params = [{transform_indices = @transform_0, window_bounds = array<i64: 8, 4>}, {pipeline_mode = #tpu.pipeline_mode<synchronous>, transform_indices = @transform_1, window_bounds = array<i64: 4, 128>}, {pipeline_mode = #tpu.pipeline_mode<synchronous>, transform_indices = @transform_2, window_bounds = array<i64: 1, 128>}, {transform_indices = @transform_3, window_bounds = array<i64: 8, 128>}]} {
    %c0 = arith.constant 0 : index
    %c0_0 = arith.constant 0 : index
    %0 = vector.load %arg1[%c0, %c0_0] : memref<8x4xf32, #tpu.memory_space<vmem>>, vector<8x4xf32>
    %c0_1 = arith.constant 0 : index
    %c0_2 = arith.constant 0 : index
    %1 = vector.load %arg2[%c0_1, %c0_2] : memref<4x128xf32, #tpu.memory_space<vmem>>, vector<4x128xf32>
    %cst = arith.constant dense<0.000000e+00> : vector<8x128xf32>
    %2 = tpu.matmul %0, %1, %cst {dimension_numbers = #tpu.dot_dimension_numbers<[1], [0], [0], [1], [0, 0, 1, 1], [], []>, precision = #tpu.contract_precision<fp32>} : vector<8x4xf32>, vector<4x128xf32>, vector<8x128xf32> -> vector<8x128xf32>
    %c0_3 = arith.constant 0 : index
    %c0_4 = arith.constant 0 : index
    %3 = vector.load %arg3[%c0_3, %c0_4] : memref<1x128xf32, #tpu.memory_space<vmem>>, vector<1x128xf32>
    %4 = vector.broadcast %3 : vector<1x128xf32> to vector<8x128xf32>
    %5 = arith.addf %2, %4 : vector<8x128xf32>
    %6 = math.cos %5 : vector<8x128xf32>
    %c0_5 = arith.constant 0 : index
    %c0_6 = arith.constant 0 : index
    %7 = vector.load %arg4[%c0_5, %c0_6] : memref<8x128xf32, #tpu.memory_space<vmem>>, vector<8x128xf32>
    tpu.vector_store %arg4[%c0_5, %c0_6], %6 {strides = array<i32>} : memref<8x128xf32, #tpu.memory_space<vmem>>, vector<8x128xf32>,
    return
  }
  func.func @transform_0(%arg0: i32) -> (i32, i32) {
    %c0_i32 = arith.constant 0 : i32
    %c0_i32_0 = arith.constant 0 : i32
    return %arg0, %c0_i32 : i32, i32
  }
  func.func @transform_1(%arg0: i32) -> (i32, i32) {
    %c0_i32 = arith.constant 0 : i32
    %c0_i32_0 = arith.constant 0 : i32
    %c0_i32_1 = arith.constant 0 : i32
    return %c0_i32, %c0_i32_0 : i32, i32
  }
  func.func @transform_2(%arg0: i32) -> (i32, i32) {
    %c0_i32 = arith.constant 0 : i32
    %c0_i32_0 = arith.constant 0 : i32
    %c0_i32_1 = arith.constant 0 : i32
    return %c0_i32, %c0_i32_0 : i32, i32
  }
  func.func @transform_3(%arg0: i32) -> (i32, i32) {
    %c0_i32 = arith.constant 0 : i32
    %c0_i32_0 = arith.constant 0 : i32
    return %arg0, %c0_i32 : i32, i32
  }
}

</mosaic_0001>

<llo_original>
// kernel: tpu_custom_call.1
$region0: #{tpu_custom_call.1}
  #allocation0 [shape = 'u32[]', space=smem, size = 0x4, offset = 0x4, fixed_abs, tag = 'smem constant byte address 0x4 - core index']
  #allocation1 [shape = 'u32[144,128]{1,0:T(1,128)}', space=vmem, size = 0x12000, scoped, tag = 'internal scratch']
  %s0 = inlined_call_operand.hbm [shape: f32[4,4], index: 0, kind: input, shape index: {}]
  %s1 = inlined_call_operand.hbm [shape: f32[4,128], index: 1, kind: input, shape index: {}]
  %s2 = inlined_call_operand.vmem [shape: f32[1,128], index: 2, kind: input, shape index: {}]
  %s3 = inlined_call_operand.hbm [shape: f32[4,128], index: 3, kind: output, shape index: {}]
  %s4 = sld [smem:[#allocation0]]
  $region30: #{tpu_custom_call.1} parent=0
    _
  %s6 = ssub.s32 1, %s4
  %s7 = scalar_select 0, %s6, %s4
  $region1: #{tpu_custom_call.1} parent=0
    #allocation2 [shape = 'u8[4096]{0}', space=vmem, size = 0x1000, scoped, tag = 'input window, operand 0, single buffered']
    #allocation3 [shape = 's32[1]{0}', space=sflag, size = 0x4, scoped, tag = 'scoped memory for tpu_custom_call.1']
    #allocation4 [shape = 's32[1]{0}', space=sflag, size = 0x4, scoped, tag = 'scoped memory for tpu_custom_call.1']
    #allocation5 [shape = 'u8[2048]{0}', space=vmem, size = 0x800, scoped, tag = 'input window, operand 1, single buffered']
    #allocation6 [shape = 's32[1]{0}', space=sflag, size = 0x4, scoped, tag = 'scoped memory for tpu_custom_call.1']
    #allocation7 [shape = 'u8[4096]{0}', space=vmem, size = 0x1000, scoped, tag = 'output window, operand 0, single buffered']
    %8 = vsyncpa [#allocation3], 0
    %9 = vsyncpa [#allocation6], 0
    %10 = vsyncpa [#allocation4], 0
    // Predicated region
    $region2: #{tpu_custom_call.1} parent=1 // pred_check
      _
    $region3: #{tpu_custom_call.1} parent=1 // pred_check_branch
      %12 = sbr.rel (0) target = $region5
    $region4: #{tpu_custom_call.1} parent=1 // pred_region
      %s14 = ssub.s32 128, 64
      %15 = vsyncadd [#allocation3], %s14
      %s16 = sshll.u32 [#allocation2], 4
      %s17 = int_to_ptr.vmem [resolvable:$true] %s16
      %22 = dma.hbm_to_vmem [thread:$0]  %s0, 64, %s17, [#allocation3], 64, 64, 4
    $region5: #{tpu_custom_call.1} parent=1 // pred_fallthru
      _
    // Predicated region
    $region6: #{tpu_custom_call.1} parent=1 // pred_check
      _
    $region7: #{tpu_custom_call.1} parent=1 // pred_check_branch
      %24 = sbr.rel (0) target = $region9
    $region8: #{tpu_custom_call.1} parent=1 // pred_region
      %s26 = ssub.s32 64, 64
      %27 = vsyncadd [#allocation6], %s26
      %s29 = sshll.u32 [#allocation5], 4
      %s30 = int_to_ptr.vmem [resolvable:$true] %s29
      %32 = dma.hbm_to_vmem [thread:$0]  %s1, 64, %s30, [#allocation6]
    $region9: #{tpu_custom_call.1} parent=1 // pred_fallthru
      _
    // Predicated region
    $region10: #{tpu_custom_call.1} parent=1 // pred_check
      _
    $region11: #{tpu_custom_call.1} parent=1 // pred_check_branch
      %34 = sbr.rel (0) target = $region13
    $region12: #{tpu_custom_call.1} parent=1 // pred_region
      _
    $region13: #{tpu_custom_call.1} parent=1 // pred_fallthru
      _
    // Predicated region
    $region14: #{tpu_custom_call.1} parent=1 // pred_check
      _
    $region15: #{tpu_custom_call.1} parent=1 // pred_check_branch
      %36 = sbr.rel (0) target = $region17
    $region16: #{tpu_custom_call.1} parent=1 // pred_region
      %37 = dma.done [#allocation3], 128
    $region17: #{tpu_custom_call.1} parent=1 // pred_fallthru
      _
    // Predicated region
    $region18: #{tpu_custom_call.1} parent=1 // pred_check
      _
    $region19: #{tpu_custom_call.1} parent=1 // pred_check_branch
      %39 = sbr.rel (0) target = $region21
    $region20: #{tpu_custom_call.1} parent=1 // pred_region
      %40 = dma.done [#allocation6], 64
    $region21: #{tpu_custom_call.1} parent=1 // pred_fallthru
      _
    %v41 = vld [vmem:[#allocation2] sm:$0xff]
    %v42 = vld [vmem:[#allocation5] sm:$0xf]
    %v43 = vld [vmem:[%s2] sm:$0x1]
    %v45 = vlaneseq
    %v46 = vshrl.u32 %v45, 7
    %v47 = vsub.s32 0, %v46
    %v48 = vrot.slane %v43, %v47
    %vm50 = vcmask 31744
    %v52 = vsel %vm50, %v41, 0
    %vm54 = vcmask 1043456
    %v56 = vsel %vm54, %v42, 0
    %58 = vmatprep.subr.mxu0 0.0
    %v59 = vand.u32 %v56, 4294901760
    %60 = vmatpush1.msra.mxu0 %v59
    %61 = vmatprep.subr.mxu0 0.0
    %62 = vmatpush1.msra.mxu0 0.0
    %63 = vmatprep.subr.mxu0 0.0
    %64 = vmatpush1.msra.mxu0 0.0
    %65 = vmatprep.subr.mxu0 0.0
    %66 = vmatpush1.msra.mxu0 0.0
    %67 = vmatprep.subr.mxu0 0.0
    %68 = vmatpush1.msra.mxu0 0.0
    %69 = vmatprep.subr.mxu0 0.0
    %70 = vmatpush1.msra.mxu0 0.0
    %71 = vmatprep.subr.mxu0 0.0
    %72 = vmatpush1.msra.mxu0 0.0
    %73 = vmatprep.subr.mxu0 0.0
    %74 = vmatpush1.msra.mxu0 0.0
    %75 = vmatprep.subr.mxu0 0.0
    %76 = vmatpush1.msra.mxu0 0.0
    %77 = vmatprep.subr.mxu0 0.0
    %78 = vmatpush1.msra.mxu0 0.0
    %79 = vmatprep.subr.mxu0 0.0
    %80 = vmatpush1.msra.mxu0 0.0
    %81 = vmatprep.subr.mxu0 0.0
    %82 = vmatpush1.msra.mxu0 0.0
    %83 = vmatprep.subr.mxu0 0.0
    %84 = vmatpush1.msra.mxu0 0.0
    %85 = vmatprep.subr.mxu0 0.0
    %86 = vmatpush1.msra.mxu0 0.0
    %87 = vmatprep.subr.mxu0 0.0
    %88 = vmatpush1.msra.mxu0 0.0
    %89 = vmatprep.subr.mxu0 0.0
    %90 = vmatpush1.msra.mxu0 0.0
    %91 = vmatprep.subr.mxu0 0.0
    %92 = vmatpush1.msra.mxu0 0.0
    %93 = vmatprep.subr.mxu0 0.0
    %94 = vmatpush1.msra.mxu0 0.0
    %95 = vmatprep.subr.mxu0 0.0
    %96 = vmatpush1.msra.mxu0 0.0
    %97 = vmatprep.subr.mxu0 0.0
    %98 = vmatpush1.msra.mxu0 0.0
    %99 = vmatprep.subr.mxu0 0.0
    %100 = vmatpush1.msra.mxu0 0.0
    %101 = vmatprep.subr.mxu0 0.0
    %102 = vmatpush1.msra.mxu0 0.0
    %103 = vmatprep.subr.mxu0 0.0
    %104 = vmatpush1.msra.mxu0 0.0
    %105 = vmatprep.subr.mxu0 0.0
    %106 = vmatpush1.msra.mxu0 0.0
    %107 = vmatprep.subr.mxu0 0.0
    %108 = vmatpush1.msra.mxu0 0.0
    %109 = vmatprep.subr.mxu0 0.0
    %110 = vmatpush1.msra.mxu0 0.0
    %111 = vmatprep.subr.mxu0 0.0
    %112 = vmatpush1.msra.mxu0 0.0
    %113 = vmatprep.subr.mxu0 0.0
    %114 = vmatpush1.msra.mxu0 0.0
    %115 = vmatprep.subr.mxu0 0.0
    %116 = vmatpush1.msra.mxu0 0.0
    %117 = vmatprep.subr.mxu0 0.0
    %118 = vmatpush1.msra.mxu0 0.0
    %119 = vmatprep.subr.mxu0 0.0
    %120 = vmatpush1.msra.mxu0 0.0
    %121 = vmatprep.subr.mxu0 0.0
    %122 = vmatpush1.msra.mxu0 0.0
    %123 = vmatprep.mubr.f32.mxu0 0.0
    %v124 = vand.u32 %v52, 4294901760
    %v125 = vsub.f32 %v52, %v124
    %v126 = vand.u32 %v125, 4294901760
    %v127 = vsub.f32 %v125, %v126
    %v128 = vand.u32 %v127, 4294901760
    %129 = vmatmul.mubr.f32.gmra.mrb[0].mxu0 %v128
    %v130 = vpop.f32.mrb[0].mxu0
    %v131 = vadd.f32 %v48, %v130
    %v132 = vpop.f32.mrb[0].mxu0
    %133 = vdwg.mxu0
    %134 = vmatprep.subr.mxu0 0.0
    %v135 = vand.u32 %v56, 4294901760
    %v136 = vsub.f32 %v56, %v135
    %v137 = vand.u32 %v136, 4294901760
    %v138 = vsub.f32 %v136, %v137
    %v139 = vand.u32 %v138, 4294901760
    %140 = vmatpush1.msra.mxu0 %v139
    %141 = vmatprep.subr.mxu0 0.0
    %142 = vmatpush1.msra.mxu0 0.0
    %143 = vmatprep.subr.mxu0 0.0
    %144 = vmatpush1.msra.mxu0 0.0
    %145 = vmatprep.subr.mxu0 0.0
    %146 = vmatpush1.msra.mxu0 0.0
    %147 = vmatprep.subr.mxu0 0.0
    %148 = vmatpush1.msra.mxu0 0.0
    %149 = vmatprep.subr.mxu0 0.0
    %150 = vmatpush1.msra.mxu0 0.0
    %151 = vmatprep.subr.mxu0 0.0
    %152 = vmatpush1.msra.mxu0 0.0
    %153 = vmatprep.subr.mxu0 0.0
    %154 = vmatpush1.msra.mxu0 0.0
    %155 = vmatprep.subr.mxu0 0.0
    %156 = vmatpush1.msra.mxu0 0.0
    %157 = vmatprep.subr.mxu0 0.0
    %158 = vmatpush1.msra.mxu0 0.0
    %159 = vmatprep.subr.mxu0 0.0
    %160 = vmatpush1.msra.mxu0 0.0
    %161 = vmatprep.subr.mxu0 0.0
    %162 = vmatpush1.msra.mxu0 0.0
    %163 = vmatprep.subr.mxu0 0.0
    %164 = vmatpush1.msra.mxu0 0.0
    %165 = vmatprep.subr.mxu0 0.0
    %166 = vmatpush1.msra.mxu0 0.0
    %167 = vmatprep.subr.mxu0 0.0
    %168 = vmatpush1.msra.mxu0 0.0
    %169 = vmatprep.subr.mxu0 0.0
    %170 = vmatpush1.msra.mxu0 0.0
    %171 = vmatprep.subr.mxu0 0.0
    %172 = vmatpush1.msra.mxu0 0.0
    %173 = vmatprep.subr.mxu0 0.0
    %174 = vmatpush1.msra.mxu0 0.0
    %175 = vmatprep.subr.mxu0 0.0
    %176 = vmatpush1.msra.mxu0 0.0
    %177 = vmatprep.subr.mxu0 0.0
    %178 = vmatpush1.msra.mxu0 0.0
    %179 = vmatprep.subr.mxu0 0.0
    %180 = vmatpush1.msra.mxu0 0.0
    %181 = vmatprep.subr.mxu0 0.0
    %182 = vmatpush1.msra.mxu0 0.0
    %183 = vmatprep.subr.mxu0 0.0
    %184 = vmatpush1.msra.mxu0 0.0
    %185 = vmatprep.subr.mxu0 0.0
    %186 = vmatpush1.msra.mxu0 0.0
    %187 = vmatprep.subr.mxu0 0.0
    %188 = vmatpush1.msra.mxu0 0.0
    %189 = vmatprep.subr.mxu0 0.0
    %190 = vmatpush1.msra.mxu0 0.0
    %191 = vmatprep.subr.mxu0 0.0
    %192 = vmatpush1.msra.mxu0 0.0
    %193 = vmatprep.subr.mxu0 0.0
    %194 = vmatpush1.msra.mxu0 0.0
    %195 = vmatprep.subr.mxu0 0.0
    %196 = vmatpush1.msra.mxu0 0.0
    %197 = vmatprep.subr.mxu0 0.0
    %198 = vmatpush1.msra.mxu0 0.0
    %199 = vmatprep.subr.mxu0 0.0
    %200 = vmatpush1.msra.mxu0 0.0
    %201 = vmatprep.subr.mxu0 0.0
    %202 = vmatpush1.msra.mxu0 0.0
    %203 = vmatprep.mubr.f32.mxu0 0.0
    %v204 = vand.u32 %v52, 4294901760
    %205 = vmatmul.mubr.f32.gmra.mrb[0].mxu0 %v204
    %v206 = vpop.f32.mrb[0].mxu0
    %v207 = vadd.f32 %v131, %v206
    %v208 = vpop.f32.mrb[0].mxu0
    %209 = vdwg.mxu0
    %210 = vmatprep.subr.mxu0 0.0
    %v211 = vand.u32 %v56, 4294901760
    %v212 = vsub.f32 %v56, %v211
    %213 = vmatpush1.msra.mxu0 %v212
    %214 = vmatprep.subr.mxu0 0.0
    %215 = vmatpush1.msra.mxu0 0.0
    %216 = vmatprep.subr.mxu0 0.0
    %217 = vmatpush1.msra.mxu0 0.0
    %218 = vmatprep.subr.mxu0 0.0
    %219 = vmatpush1.msra.mxu0 0.0
    %220 = vmatprep.subr.mxu0 0.0
    %221 = vmatpush1.msra.mxu0 0.0
    %222 = vmatprep.subr.mxu0 0.0
    %223 = vmatpush1.msra.mxu0 0.0
    %224 = vmatprep.subr.mxu0 0.0
    %225 = vmatpush1.msra.mxu0 0.0
    %226 = vmatprep.subr.mxu0 0.0
    %227 = vmatpush1.msra.mxu0 0.0
    %228 = vmatprep.subr.mxu0 0.0
    %229 = vmatpush1.msra.mxu0 0.0
    %230 = vmatprep.subr.mxu0 0.0
    %231 = vmatpush1.msra.mxu0 0.0
    %232 = vmatprep.subr.mxu0 0.0
    %233 = vmatpush1.msra.mxu0 0.0
    %234 = vmatprep.subr.mxu0 0.0
    %235 = vmatpush1.msra.mxu0 0.0
    %236 = vmatprep.subr.mxu0 0.0
    %237 = vmatpush1.msra.mxu0 0.0
    %238 = vmatprep.subr.mxu0 0.0
    %239 = vmatpush1.msra.mxu0 0.0
    %240 = vmatprep.subr.mxu0 0.0
    %241 = vmatpush1.msra.mxu0 0.0
    %242 = vmatprep.subr.mxu0 0.0
    %243 = vmatpush1.msra.mxu0 0.0
    %244 = vmatprep.subr.mxu0 0.0
    %245 = vmatpush1.msra.mxu0 0.0
    %246 = vmatprep.subr.mxu0 0.0
    %247 = vmatpush1.msra.mxu0 0.0
    %248 = vmatprep.subr.mxu0 0.0
    %249 = vmatpush1.msra.mxu0 0.0
    %250 = vmatprep.subr.mxu0 0.0
    %251 = vmatpush1.msra.mxu0 0.0
    %252 = vmatprep.subr.mxu0 0.0
    %253 = vmatpush1.msra.mxu0 0.0
    %254 = vmatprep.subr.mxu0 0.0
    %255 = vmatpush1.msra.mxu0 0.0
    %256 = vmatprep.subr.mxu0 0.0
    %257 = vmatpush1.msra.mxu0 0.0
    %258 = vmatprep.subr.mxu0 0.0
    %259 = vmatpush1.msra.mxu0 0.0
    %260 = vmatprep.subr.mxu0 0.0
    %261 = vmatpush1.msra.mxu0 0.0
    %262 = vmatprep.subr.mxu0 0.0
    %263 = vmatpush1.msra.mxu0 0.0
    %264 = vmatprep.subr.mxu0 0.0
    %265 = vmatpush1.msra.mxu0 0.0
    %266 = vmatprep.subr.mxu0 0.0
    %267 = vmatpush1.msra.mxu0 0.0
    %268 = vmatprep.subr.mxu0 0.0
    %269 = vmatpush1.msra.mxu0 0.0
    %270 = vmatprep.subr.mxu0 0.0
    %271 = vmatpush1.msra.mxu0 0.0
    %272 = vmatprep.subr.mxu0 0.0
    %273 = vmatpush1.msra.mxu0 0.0
    %274 = vmatprep.subr.mxu0 0.0
    %275 = vmatpush1.msra.mxu0 0.0
    %276 = vmatprep.mubr.f32.mxu0 0.0
    %v277 = vand.u32 %v52, 4294901760
    %v278 = vsub.f32 %v52, %v277
    %279 = vmatmul.mubr.f32.gmra.mrb[0].mxu0 %v278
    %v280 = vpop.f32.mrb[0].mxu0
    %v281 = vadd.f32 %v207, %v280
    %v282 = vpop.f32.mrb[0].mxu0
    %283 = vdwg.mxu0
    %284 = vmatprep.subr.mxu0 0.0
    %v285 = vand.u32 %v56, 4294901760
    %286 = vmatpush1.msra.mxu0 %v285
    %287 = vmatprep.subr.mxu0 0.0
    %288 = vmatpush1.msra.mxu0 0.0
    %289 = vmatprep.subr.mxu0 0.0
    %290 = vmatpush1.msra.mxu0 0.0
    %291 = vmatprep.subr.mxu0 0.0
    %292 = vmatpush1.msra.mxu0 0.0
    %293 = vmatprep.subr.mxu0 0.0
    %294 = vmatpush1.msra.mxu0 0.0
    %295 = vmatprep.subr.mxu0 0.0
    %296 = vmatpush1.msra.mxu0 0.0
    %297 = vmatprep.subr.mxu0 0.0
    %298 = vmatpush1.msra.mxu0 0.0
    %299 = vmatprep.subr.mxu0 0.0
    %300 = vmatpush1.msra.mxu0 0.0
    %301 = vmatprep.subr.mxu0 0.0
    %302 = vmatpush1.msra.mxu0 0.0
    %303 = vmatprep.subr.mxu0 0.0
    %304 = vmatpush1.msra.mxu0 0.0
    %305 = vmatprep.subr.mxu0 0.0
    %306 = vmatpush1.msra.mxu0 0.0
    %307 = vmatprep.subr.mxu0 0.0
    %308 = vmatpush1.msra.mxu0 0.0
    %309 = vmatprep.subr.mxu0 0.0
    %310 = vmatpush1.msra.mxu0 0.0
    %311 = vmatprep.subr.mxu0 0.0
    %312 = vmatpush1.msra.mxu0 0.0
    %313 = vmatprep.subr.mxu0 0.0
    %314 = vmatpush1.msra.mxu0 0.0
    %315 = vmatprep.subr.mxu0 0.0
    %316 = vmatpush1.msra.mxu0 0.0
    %317 = vmatprep.subr.mxu0 0.0
    %318 = vmatpush1.msra.mxu0 0.0
    %319 = vmatprep.subr.mxu0 0.0
    %320 = vmatpush1.msra.mxu0 0.0
    %321 = vmatprep.subr.mxu0 0.0
    %322 = vmatpush1.msra.mxu0 0.0
    %323 = vmatprep.subr.mxu0 0.0
    %324 = vmatpush1.msra.mxu0 0.0
    %325 = vmatprep.subr.mxu0 0.0
    %326 = vmatpush1.msra.mxu0 0.0
    %327 = vmatprep.subr.mxu0 0.0
    %328 = vmatpush1.msra.mxu0 0.0
    %329 = vmatprep.subr.mxu0 0.0
    %330 = vmatpush1.msra.mxu0 0.0
    %331 = vmatprep.subr.mxu0 0.0
    %332 = vmatpush1.msra.mxu0 0.0
    %333 = vmatprep.subr.mxu0 0.0
    %334 = vmatpush1.msra.mxu0 0.0
    %335 = vmatprep.subr.mxu0 0.0
    %336 = vmatpush1.msra.mxu0 0.0
    %337 = vmatprep.subr.mxu0 0.0
    %338 = vmatpush1.msra.mxu0 0.0
    %339 = vmatprep.subr.mxu0 0.0
    %340 = vmatpush1.msra.mxu0 0.0
    %341 = vmatprep.subr.mxu0 0.0
    %342 = vmatpush1.msra.mxu0 0.0
    %343 = vmatprep.subr.mxu0 0.0
    %344 = vmatpush1.msra.mxu0 0.0
    %345 = vmatprep.subr.mxu0 0.0
    %346 = vmatpush1.msra.mxu0 0.0
    %347 = vmatprep.subr.mxu0 0.0
    %348 = vmatpush1.msra.mxu0 0.0
    %349 = vmatprep.mubr.f32.mxu0 0.0
    %v350 = vand.u32 %v52, 4294901760
    %v351 = vsub.f32 %v52, %v350
    %v352 = vand.u32 %v351, 4294901760
    %353 = vmatmul.mubr.f32.gmra.mrb[0].mxu0 %v352
    %v354 = vpop.f32.mrb[0].mxu0
    %v355 = vadd.f32 %v281, %v354
    %v356 = vpop.f32.mrb[0].mxu0
    %357 = vdwg.mxu0
    %358 = vmatprep.subr.mxu0 0.0
    %v359 = vand.u32 %v56, 4294901760
    %v360 = vsub.f32 %v56, %v359
    %v361 = vand.u32 %v360, 4294901760
    %362 = vmatpush1.msra.mxu0 %v361
    %363 = vmatprep.subr.mxu0 0.0
    %364 = vmatpush1.msra.mxu0 0.0
    %365 = vmatprep.subr.mxu0 0.0
    %366 = vmatpush1.msra.mxu0 0.0
    %367 = vmatprep.subr.mxu0 0.0
    %368 = vmatpush1.msra.mxu0 0.0
    %369 = vmatprep.subr.mxu0 0.0
    %370 = vmatpush1.msra.mxu0 0.0
    %371 = vmatprep.subr.mxu0 0.0
    %372 = vmatpush1.msra.mxu0 0.0
    %373 = vmatprep.subr.mxu0 0.0
    %374 = vmatpush1.msra.mxu0 0.0
    %375 = vmatprep.subr.mxu0 0.0
    %376 = vmatpush1.msra.mxu0 0.0
    %377 = vmatprep.subr.mxu0 0.0
    %378 = vmatpush1.msra.mxu0 0.0
    %379 = vmatprep.subr.mxu0 0.0
    %380 = vmatpush1.msra.mxu0 0.0
    %381 = vmatprep.subr.mxu0 0.0
    %382 = vmatpush1.msra.mxu0 0.0
    %383 = vmatprep.subr.mxu0 0.0
    %384 = vmatpush1.msra.mxu0 0.0
    %385 = vmatprep.subr.mxu0 0.0
    %386 = vmatpush1.msra.mxu0 0.0
    %387 = vmatprep.subr.mxu0 0.0
    %388 = vmatpush1.msra.mxu0 0.0
    %389 = vmatprep.subr.mxu0 0.0
    %390 = vmatpush1.msra.mxu0 0.0
    %391 = vmatprep.subr.mxu0 0.0
    %392 = vmatpush1.msra.mxu0 0.0
    %393 = vmatprep.subr.mxu0 0.0
    %394 = vmatpush1.msra.mxu0 0.0
    %395 = vmatprep.subr.mxu0 0.0
    %396 = vmatpush1.msra.mxu0 0.0
    %397 = vmatprep.subr.mxu0 0.0
    %398 = vmatpush1.msra.mxu0 0.0
    %399 = vmatprep.subr.mxu0 0.0
    %400 = vmatpush1.msra.mxu0 0.0
    %401 = vmatprep.subr.mxu0 0.0
    %402 = vmatpush1.msra.mxu0 0.0
    %403 = vmatprep.subr.mxu0 0.0
    %404 = vmatpush1.msra.mxu0 0.0
    %405 = vmatprep.subr.mxu0 0.0
    %406 = vmatpush1.msra.mxu0 0.0
    %407 = vmatprep.subr.mxu0 0.0
    %408 = vmatpush1.msra.mxu0 0.0
    %409 = vmatprep.subr.mxu0 0.0
    %410 = vmatpush1.msra.mxu0 0.0
    %411 = vmatprep.subr.mxu0 0.0
    %412 = vmatpush1.msra.mxu0 0.0
    %413 = vmatprep.subr.mxu0 0.0
    %414 = vmatpush1.msra.mxu0 0.0
    %415 = vmatprep.subr.mxu0 0.0
    %416 = vmatpush1.msra.mxu0 0.0
    %417 = vmatprep.subr.mxu0 0.0
    %418 = vmatpush1.msra.mxu0 0.0
    %419 = vmatprep.subr.mxu0 0.0
    %420 = vmatpush1.msra.mxu0 0.0
    %421 = vmatprep.subr.mxu0 0.0
    %422 = vmatpush1.msra.mxu0 0.0
    %423 = vmatprep.subr.mxu0 0.0
    %424 = vmatpush1.msra.mxu0 0.0
    %425 = vmatprep.mubr.f32.mxu0 0.0
    %v426 = vand.u32 %v52, 4294901760
    %427 = vmatmul.mubr.f32.gmra.mrb[0].mxu0 %v426
    %v428 = vpop.f32.mrb[0].mxu0
    %v429 = vadd.f32 %v355, %v428
    %v430 = vpop.f32.mrb[0].mxu0
    %431 = vdwg.mxu0
    %432 = vmatprep.subr.mxu0 0.0
    %v433 = vand.u32 %v56, 4294901760
    %434 = vmatpush1.msra.mxu0 %v433
    %435 = vmatprep.subr.mxu0 0.0
    %436 = vmatpush1.msra.mxu0 0.0
    %437 = vmatprep.subr.mxu0 0.0
    %438 = vmatpush1.msra.mxu0 0.0
    %439 = vmatprep.subr.mxu0 0.0
    %440 = vmatpush1.msra.mxu0 0.0
    %441 = vmatprep.subr.mxu0 0.0
    %442 = vmatpush1.msra.mxu0 0.0
    %443 = vmatprep.subr.mxu0 0.0
    %444 = vmatpush1.msra.mxu0 0.0
    %445 = vmatprep.subr.mxu0 0.0
    %446 = vmatpush1.msra.mxu0 0.0
    %447 = vmatprep.subr.mxu0 0.0
    %448 = vmatpush1.msra.mxu0 0.0
    %449 = vmatprep.subr.mxu0 0.0
    %450 = vmatpush1.msra.mxu0 0.0
    %451 = vmatprep.subr.mxu0 0.0
    %452 = vmatpush1.msra.mxu0 0.0
    %453 = vmatprep.subr.mxu0 0.0
    %454 = vmatpush1.msra.mxu0 0.0
    %455 = vmatprep.subr.mxu0 0.0
    %456 = vmatpush1.msra.mxu0 0.0
    %457 = vmatprep.subr.mxu0 0.0
    %458 = vmatpush1.msra.mxu0 0.0
    %459 = vmatprep.subr.mxu0 0.0
    %460 = vmatpush1.msra.mxu0 0.0
    %461 = vmatprep.subr.mxu0 0.0
    %462 = vmatpush1.msra.mxu0 0.0
    %463 = vmatprep.subr.mxu0 0.0
    %464 = vmatpush1.msra.mxu0 0.0
    %465 = vmatprep.subr.mxu0 0.0
    %466 = vmatpush1.msra.mxu0 0.0
    %467 = vmatprep.subr.mxu0 0.0
    %468 = vmatpush1.msra.mxu0 0.0
    %469 = vmatprep.subr.mxu0 0.0
    %470 = vmatpush1.msra.mxu0 0.0
    %471 = vmatprep.subr.mxu0 0.0
    %472 = vmatpush1.msra.mxu0 0.0
    %473 = vmatprep.subr.mxu0 0.0
    %474 = vmatpush1.msra.mxu0 0.0
    %475 = vmatprep.subr.mxu0 0.0
    %476 = vmatpush1.msra.mxu0 0.0
    %477 = vmatprep.subr.mxu0 0.0
    %478 = vmatpush1.msra.mxu0 0.0
    %479 = vmatprep.subr.mxu0 0.0
    %480 = vmatpush1.msra.mxu0 0.0
    %481 = vmatprep.subr.mxu0 0.0
    %482 = vmatpush1.msra.mxu0 0.0
    %483 = vmatprep.subr.mxu0 0.0
    %484 = vmatpush1.msra.mxu0 0.0
    %485 = vmatprep.subr.mxu0 0.0
    %486 = vmatpush1.msra.mxu0 0.0
    %487 = vmatprep.subr.mxu0 0.0
    %488 = vmatpush1.msra.mxu0 0.0
    %489 = vmatprep.subr.mxu0 0.0
    %490 = vmatpush1.msra.mxu0 0.0
    %491 = vmatprep.subr.mxu0 0.0
    %492 = vmatpush1.msra.mxu0 0.0
    %493 = vmatprep.subr.mxu0 0.0
    %494 = vmatpush1.msra.mxu0 0.0
    %495 = vmatprep.subr.mxu0 0.0
    %496 = vmatpush1.msra.mxu0 0.0
    %497 = vmatprep.mubr.f32.mxu0 0.0
    %v498 = vand.u32 %v52, 4294901760
    %499 = vmatmul.mubr.f32.gmra.mrb[0].mxu0 %v498
    %v500 = vpop.f32.mrb[0].mxu0
    %v501 = vadd.f32 %v429, %v500
    %v502 = vpop.f32.mrb[0].mxu0
    %503 = vdwg.mxu0
    %v504 = vand.u32 2147483647, %v501
    %vm505 = vcmp.le.f32.partialorder %v504, 0.7853982
    %vm506 = vcmp.lt.s32.totalorder %v501, 0
    %v507 = vand.u32 %v501, 2139095040
    %v508 = vshrl.u32 %v507, 23
    %v509 = vsub.s32 %v508, 127
    %v510 = vand.u32 2147483647, %v501
    %v511 = vand.u32 %v510, 8388607
    %v512 = vor.u32 %v511, 8388608
    %v513 = vsub.s32 0, %v512
    %v514 = vadd.s32 %v509, 1
    %vm515 = vcmp.gt.s32.totalorder %v514, 0
    %v516 = vsel %vm515, %v514, 0
    %v517 = vshrl.u32 %v516, 5
    %v518 = vand.u32 %v516, 31
    %v519 = vsub.s32 32, %v518
    %v520 = vshrl.u32 683565275, %v519
    %v521 = vshll.u32 683565275, %v518
    %v522 = vshrl.u32 2475754826, %v519
    %v523 = vor.u32 %v521, %v522
    %v524 = vshll.u32 2475754826, %v518
    %v525 = vshrl.u32 2131351028, %v519
    %v526 = vor.u32 %v524, %v525
    %v527 = vshll.u32 2131351028, %v518
    %v528 = vshrl.u32 2102212464, %v519
    %v529 = vor.u32 %v527, %v528
    %v530 = vshll.u32 2102212464, %v518
    %v531 = vshrl.u32 920167782, %v519
    %v532 = vor.u32 %v530, %v531
    %v533 = vshll.u32 920167782, %v518
    %v534 = vshrl.u32 1326507024, %v519
    %v535 = vor.u32 %v533, %v534
    %vm536 = vcmp.lt.s32.totalorder %v517, 1
    %vm537 = vcmp.lt.s32.totalorder %v517, 2
    %vm538 = vcmp.lt.s32.totalorder %v517, 3
    %vm539 = vcmp.lt.s32.totalorder %v517, 4
    %v540 = vsel %vm536, %v520, %v523
    %v541 = vsel %vm539, %v529, 2102212464
    %v542 = vsel %vm538, %v526, %v541
    %v543 = vsel %vm537, %v540, %v542
    %v544 = vsel %vm536, %v523, %v526
    %v545 = vsel %vm539, %v532, 920167782
    %v546 = vsel %vm538, %v529, %v545
    %v547 = vsel %vm537, %v544, %v546
    %v548 = vsel %vm536, %v526, %v529
    %v549 = vsel %vm539, %v535, 1326507024
    %v550 = vsel %vm538, %v532, %v549
    %v551 = vsel %vm537, %v548, %v550
    %v552 = vshll.u32 %v512, 8
    %v553 = vmul.u32.u64.compose %v552, %v551
    %v554 = vextract.low.u32 %v553
    %v555 = vextract.high.u32 %v553
    %v556 = vmul.u32.u64.compose %v552, %v547
    %v557 = vextract.low.u32 %v556
    %v558 = vextract.high.u32 %v556
    %v559 = vmul.u32 %v552, %v543
    %v560 = vadd.s32 %v555, %v557
    %vm561 = vc.u32 %v555, %v557
    %v562 = vadd.s32 %v558, 1
    %v563 = vsel %vm561, %v562, %v558
    %v564 = vadd.s32 %v559, %v563
    %v565 = vadd.s32 %v564, 536870912
    %v566 = vshrl.u32 %v565, 30
    %v567 = vshll.u32 %v566, 30
    %v568 = vsub.s32 %v564, %v567
    %vm569 = vcmp.lt.s32.totalorder %v568, 0
    %v570 = vsub.s32 0, %v568
    %v571 = vsel %vm569, %v570, %v568
    %v572 = vclz %v571
    %v573 = vsub.s32 %v572, 2
    %vm574 = vcmp.gt.s32.totalorder 0, %v573
    %v575 = vsel %vm574, 0, %v573
    %v576 = vsub.s32 32, %v575
    %v577 = vshll.u32 %v568, %v575
    %v578 = vshrl.u32 %v560, %v576
    %v579 = vor.u32 %v577, %v578
    %v580 = vsub.s32 4294967266, %v575
    %v581 = vadd.s32 %v580, 127
    %v582 = vshll.u32 %v581, 23
    %v583 = vor.u32 4788187, %v582
    %v584 = vand.u32 2147483647, %v583
    %v586 = vcvt.s32.f32 %v579
    %v587 = vmul.f32 %v586, %v584
    %v588 = vxor.u32 %v587, 2147483648
    %v589 = vsel %vm506, %v588, %v587
    %v590 = vsub.s32 4, %v566
    %v591 = vsel %vm506, %v590, %v566
    %v592 = vsel %vm505, %v501, %v589
    %v593 = vsel %vm505, 0, %v591
    %v594 = vcosq.f32.pop %v592
    %v595 = vsinq.f32.pop %v592
    %vm596 = vweird.f32 %v501
    %v597 = vand.u32 %v593, 3
    %vm598 = vcmp.lt.s32.totalorder %v597, 2
    %vm599 = vcmp.eq.s32.totalorder %v597, 0
    %v600 = vxor.u32 %v595, 2147483648
    %v601 = vsel %vm599, %v594, %v600
    %vm602 = vcmp.eq.s32.totalorder %v597, 2
    %v603 = vxor.u32 %v594, 2147483648
    %v604 = vsel %vm602, %v603, %v595
    %v605 = vsel %vm598, %v601, %v604
    %v606 = vsel %vm596, nan, %v605
    %607 = vst [vmem:[#allocation7] sm:$0xff] %v606
    // Predicated region
    $region22: #{tpu_custom_call.1} parent=1 // pred_check
      _
    $region23: #{tpu_custom_call.1} parent=1 // pred_check_branch
      %609 = sbr.rel (0) target = $region25
    $region24: #{tpu_custom_call.1} parent=1 // pred_region
      %s611 = ssub.s32 128, 64
      %612 = vsyncadd [#allocation4], %s611
      %s613 = sshll.u32 [#allocation7], 4
      %s614 = int_to_ptr.vmem [resolvable:$true] %s613
      %619 = dma.vmem_to_hbm [thread:$0]  %s614, 64, %s3, [#allocation4], 64, 64, 4
    $region25: #{tpu_custom_call.1} parent=1 // pred_fallthru
      _
    // Predicated region
    $region26: #{tpu_custom_call.1} parent=1 // pred_check
      _
    $region27: #{tpu_custom_call.1} parent=1 // pred_check_branch
      %621 = sbr.rel (0) target = $region29
    $region28: #{tpu_custom_call.1} parent=1 // pred_region
      %622 = dma.done [#allocation4], 128
    $region29: #{tpu_custom_call.1} parent=1 // pred_fallthru
      _
    %623 = vsyncpa [#allocation3], 1
    %624 = vsyncpa [#allocation6], 1
    %625 = vsyncpa [#allocation4], 1

</llo_original>
